<compile_context>
chip_gen: v7x
topology: tpu7x:2x2x1
jax: 0.10.0
libtpu: 0.0.40
codegen_flags: <defaults>
</compile_context>

<pallas_src>
import jax
import jax.numpy as jnp
from jax.experimental import pallas as pl
from jax.experimental.pallas import tpu as pltpu


def _net_kernel(x_ref, w1_ref, b1_ref, w2_ref, b2_ref, o_ref):
    x = x_ref[...]                                                 # (TB, F) f32
    # Layer 1 on the MXU: (TB, F) @ (F, H), f32 accumulate.
    h = jnp.dot(x, w1_ref[...], preferred_element_type=jnp.float32)
    h = jnp.maximum(h + b1_ref[...], 0.0)                          # bias + ReLU (VPU)
    # Layer 2 (H -> 1): elementwise multiply (VPU) + lane reduction (XLU),
    # b2 added as an SMEM scalar — no second MXU pass for a 1-wide output.
    y = jnp.sum(h * w2_ref[...], axis=-1, keepdims=True) + b2_ref[0, 0]
    # Sigmoid = 1 / (1 + exp(-y)); exp and approx reciprocal both go to the EUP.
    o_ref[...] = pl.reciprocal(1.0 + jnp.exp(-y), approx=True)


def net_forward(x, w1, b1, w2, b2, *, batch_tile=256):
    """Forward pass of Net. x: (B, F); w1: (F, H); b1: (1, H); w2: (1, H); b2: (1, 1)."""
    B, F = x.shape
    H = w1.shape[1]
    out_shape = jax.ShapeDtypeStruct((B, 1), jnp.float32)

    if B <= batch_tile or B % batch_tile != 0:
        # Tiny problem: no grid at all -> no double-buffering / pipeline
        # machinery, a single kernel invocation with everything in VMEM
        # (b2 scalar in SMEM).
        return pl.pallas_call(
            _net_kernel,
            out_shape=out_shape,
            in_specs=[
                pl.BlockSpec(memory_space=pltpu.MemorySpace.VMEM),   # x
                pl.BlockSpec(memory_space=pltpu.MemorySpace.VMEM),   # w1
                pl.BlockSpec(memory_space=pltpu.MemorySpace.VMEM),   # b1
                pl.BlockSpec(memory_space=pltpu.MemorySpace.VMEM),   # w2
                pl.BlockSpec(memory_space=pltpu.MemorySpace.SMEM),   # b2 scalar
            ],
            out_specs=pl.BlockSpec(memory_space=pltpu.MemorySpace.VMEM),
        )(x, w1, b1, w2, b2)

    # Large batch: tile the batch dimension; weights/biases use a constant
    # index_map so they stay VMEM-resident across grid steps. "parallel"
    # lets megacore parts (v7x: 2 TCs/chip) split the batch axis.
    # TODO(synk): for store-bound very large B, emit a lane-dense (1, B) output
    # slab instead of (B, 1); load traffic (F=30 f32/row) dominates here.
    grid = (B // batch_tile,)
    return pl.pallas_call(
        _net_kernel,
        out_shape=out_shape,
        grid=grid,
        in_specs=[
            pl.BlockSpec((batch_tile, F), lambda i: (i, 0)),                      # x
            pl.BlockSpec((F, H), lambda i: (0, 0)),                               # w1
            pl.BlockSpec((1, H), lambda i: (0, 0)),                               # b1
            pl.BlockSpec((1, H), lambda i: (0, 0)),                               # w2
            pl.BlockSpec((1, 1), lambda i: (0, 0),
                         memory_space=pltpu.MemorySpace.SMEM),                    # b2
        ],
        out_specs=pl.BlockSpec((batch_tile, 1), lambda i: (i, 0)),
        compiler_params=pltpu.CompilerParams(
            dimension_semantics=("parallel",),
        ),
    )(x, w1, b1, w2, b2)


def init_params(key, input_size=30, scale=4):
    """Deterministic init mirroring nn.Linear default (U[-1/sqrt(fan_in), 1/sqrt(fan_in)])."""
    hidden = 10 * scale
    k1, k2, k3, k4 = jax.random.split(key, 4)
    bound1 = 1.0 / (input_size ** 0.5)
    bound2 = 1.0 / (hidden ** 0.5)
    w1 = jax.random.uniform(k1, (input_size, hidden), jnp.float32, -bound1, bound1)
    b1 = jax.random.uniform(k2, (1, hidden), jnp.float32, -bound1, bound1)
    w2 = jax.random.uniform(k3, (1, hidden), jnp.float32, -bound2, bound2)   # PyTorch layout (out, in)
    b2 = jax.random.uniform(k4, (1, 1), jnp.float32, -bound2, bound2)
    return w1, b1, w2, b2


def _reference(x, w1, b1, w2, b2):
    h = jnp.maximum(x @ w1 + b1, 0.0)
    return jax.nn.sigmoid(h @ w2.T + b2)


if __name__ == "__main__":
    key = jax.random.PRNGKey(0)
    kx, kp, kx2 = jax.random.split(key, 3)

    input_size, scale = 30, 4
    w1, b1, w2, b2 = init_params(kp, input_size=input_size, scale=scale)

    # Small batch -> grid-less path (matches the aggregator's tiny workload).
    B = 8
    x = jax.random.normal(kx, (B, input_size), jnp.float32)
    out = jax.block_until_ready(net_forward(x, w1, b1, w2, b2))
    ref = _reference(x, w1, b1, w2, b2)
    assert out.shape == (B, 1)
    # approx=True reciprocal is EUP-approximate; tolerance reflects that
    # (sigmoid outputs are in [0, 1], so atol is the meaningful bound).
    assert jnp.allclose(out, ref, atol=2e-3, rtol=0), "small-batch mismatch"

    # Larger batch -> batch-tiled path with parallel semantics.
    B2 = 512
    x2 = jax.random.normal(kx2, (B2, input_size), jnp.float32)
    out2 = jax.block_until_ready(net_forward(x2, w1, b1, w2, b2, batch_tile=128))
    ref2 = _reference(x2, w1, b1, w2, b2)
    assert out2.shape == (B2, 1)
    assert jnp.allclose(out2, ref2, atol=2e-3, rtol=0), "tiled-batch mismatch"

    print("KERNEL_OK")
</pallas_src>

<mosaic_0001>
module attributes {stable_mosaic.version = 11 : i64} {
  func.func @_net_kernel(%arg0: memref<8x30xf32, #tpu.memory_space<vmem>>, %arg1: memref<30x40xf32, #tpu.memory_space<vmem>>, %arg2: memref<1x40xf32, #tpu.memory_space<vmem>>, %arg3: memref<1x40xf32, #tpu.memory_space<vmem>>, %arg4: memref<1x1xf32, #tpu.memory_space<smem>>, %arg5: memref<8x1xf32, #tpu.memory_space<vmem>>) attributes {dimension_semantics = [], scalar_prefetch = 0 : i64, scratch_operands = 0 : i64, tpu.core_type = #tpu.core_type<tc>} {
    %c0 = arith.constant 0 : index
    %c0_0 = arith.constant 0 : index
    %0 = vector.load %arg0[%c0, %c0_0] : memref<8x30xf32, #tpu.memory_space<vmem>>, vector<8x30xf32>
    %c0_1 = arith.constant 0 : index
    %c0_2 = arith.constant 0 : index
    %1 = vector.load %arg1[%c0_1, %c0_2] : memref<30x40xf32, #tpu.memory_space<vmem>>, vector<30x40xf32>
    %cst = arith.constant dense<0.000000e+00> : vector<8x40xf32>
    %2 = tpu.matmul %0, %1, %cst {dimension_numbers = #tpu.dot_dimension_numbers<[1], [0], [0], [1], [0, 0, 1, 1], [], []>} : vector<8x30xf32>, vector<30x40xf32>, vector<8x40xf32> -> vector<8x40xf32>
    %c0_3 = arith.constant 0 : index
    %c0_4 = arith.constant 0 : index
    %3 = vector.load %arg2[%c0_3, %c0_4] : memref<1x40xf32, #tpu.memory_space<vmem>>, vector<1x40xf32>
    %4 = vector.broadcast %3 : vector<1x40xf32> to vector<8x40xf32>
    %5 = arith.addf %2, %4 : vector<8x40xf32>
    %cst_5 = arith.constant 0.000000e+00 : f32
    %6 = vector.broadcast %cst_5 : f32 to vector<8x40xf32>
    %7 = arith.maximumf %5, %6 : vector<8x40xf32>
    %c0_6 = arith.constant 0 : index
    %c0_7 = arith.constant 0 : index
    %8 = vector.load %arg3[%c0_6, %c0_7] : memref<1x40xf32, #tpu.memory_space<vmem>>, vector<1x40xf32>
    %9 = vector.broadcast %8 : vector<1x40xf32> to vector<8x40xf32>
    %10 = arith.mulf %7, %9 : vector<8x40xf32>
    %cst_8 = arith.constant dense<0.000000e+00> : vector<8xf32>
    %11 = vector.multi_reduction <add>, %10, %cst_8 [1] : vector<8x40xf32> to vector<8xf32>
    %12 = vector.shape_cast %11 : vector<8xf32> to vector<8x1xf32>
    %c0_9 = arith.constant 0 : index
    %c0_10 = arith.constant 0 : index
    %13 = memref.load %arg4[%c0_9, %c0_10] : memref<1x1xf32, #tpu.memory_space<smem>>
    %14 = vector.broadcast %13 : f32 to vector<8x1xf32>
    %15 = arith.addf %12, %14 : vector<8x1xf32>
    %cst_11 = arith.constant 0.000000e+00 : f32
    %16 = vector.broadcast %cst_11 : f32 to vector<8x1xf32>
    %17 = arith.subf %16, %15 : vector<8x1xf32>
    %18 = math.exp %17 : vector<8x1xf32>
    %cst_12 = arith.constant 1.000000e+00 : f32
    %19 = vector.broadcast %cst_12 : f32 to vector<8x1xf32>
    %20 = arith.addf %19, %18 : vector<8x1xf32>
    %21 = tpu.reciprocal %20 {approx = true} : vector<8x1xf32> -> vector<8x1xf32>
    %c0_13 = arith.constant 0 : index
    %c0_14 = arith.constant 0 : index
    %22 = vector.load %arg5[%c0_13, %c0_14] : memref<8x1xf32, #tpu.memory_space<vmem>>, vector<8x1xf32>
    tpu.vector_store %arg5[%c0_13, %c0_14], %21 {strides = array<i32>} : memref<8x1xf32, #tpu.memory_space<vmem>>, vector<8x1xf32>,
    return
  }
}

</mosaic_0001>

<llo_original>
// kernel: tpu_custom_call.1
$region0: #{tpu_custom_call.1}
  #allocation0 [shape = 'u32[]', space=smem, size = 0x4, offset = 0x4, fixed_abs, tag = 'smem constant byte address 0x4 - core index']
  #allocation1 [shape = 'u32[144,128]{1,0:T(1,128)}', space=vmem, size = 0x12000, scoped, tag = 'internal scratch']
  #allocation2 [shape = 'f32[1,1]{1,0:T(1,128)S(6)}', space=smem, size = 0x200, scoped, tag = 'scoped memory for tpu_custom_call.1']
  %s0 = inlined_call_operand.hbm [shape: f32[8,30], index: 0, kind: input, shape index: {}]
  %s1 = inlined_call_operand.hbm [shape: f32[30,40], index: 1, kind: input, shape index: {}]
  %s2 = inlined_call_operand.vmem [shape: f32[1,40], index: 2, kind: input, shape index: {}]
  %s3 = inlined_call_operand.vmem [shape: f32[1,40], index: 3, kind: input, shape index: {}]
  %s4 = inlined_call_operand.<no memory space> [shape: f32[1,1], index: 4, kind: input, shape index: {}]
  %s5 = inlined_call_operand.vmem [shape: f32[8,1], index: 5, kind: output, shape index: {}]
  %s6 = sld [smem:[#allocation0]]
  $region38: #{tpu_custom_call.1} parent=0
    _
  %s8 = ssub.s32 1, %s6
  %s9 = scalar_select 0, %s8, %s6
  %10 = sst [smem:[#allocation2]] %s4
  $region1: #{tpu_custom_call.1} parent=0
    #allocation3 [shape = 'u8[4096]{0}', space=vmem, size = 0x1000, scoped, tag = 'input window, operand 0, single buffered']
    #allocation4 [shape = 's32[1]{0}', space=sflag, size = 0x4, scoped, tag = 'scoped memory for tpu_custom_call.1']
    #allocation5 [shape = 'u8[16384]{0}', space=vmem, size = 0x4000, scoped, tag = 'input window, operand 1, single buffered']
    #allocation6 [shape = 's32[1]{0}', space=sflag, size = 0x4, scoped, tag = 'scoped memory for tpu_custom_call.1']
    %11 = vsyncpa [#allocation4], 0
    %12 = vsyncpa [#allocation6], 0
    // Predicated region
    $region2: #{tpu_custom_call.1} parent=1 // pred_check
      _
    $region3: #{tpu_custom_call.1} parent=1 // pred_check_branch
      %14 = sbr.rel (0) target = $region5
    $region4: #{tpu_custom_call.1} parent=1 // pred_region
      %s16 = ssub.s32 128, 128
      %17 = vsyncadd [#allocation4], %s16
      %s19 = sshll.u32 [#allocation3], 4
      %s20 = int_to_ptr.vmem [resolvable:$true] %s19
      %22 = dma.hbm_to_vmem [thread:$0]  %s0, 128, %s20, [#allocation4]
    $region5: #{tpu_custom_call.1} parent=1 // pred_fallthru
      _
    // Predicated region
    $region6: #{tpu_custom_call.1} parent=1 // pred_check
      _
    $region7: #{tpu_custom_call.1} parent=1 // pred_check_branch
      %24 = sbr.rel (0) target = $region9
    $region8: #{tpu_custom_call.1} parent=1 // pred_region
      %s26 = ssub.s32 512, 512
      %27 = vsyncadd [#allocation6], %s26
      %s28 = sshll.u32 [#allocation5], 4
      %s29 = int_to_ptr.vmem [resolvable:$true] %s28
      %34 = dma.hbm_to_vmem [thread:$0]  %s1, 512, %s29, [#allocation6], 128, 128, 8
    $region9: #{tpu_custom_call.1} parent=1 // pred_fallthru
      _
    // Predicated region
    $region10: #{tpu_custom_call.1} parent=1 // pred_check
      _
    $region11: #{tpu_custom_call.1} parent=1 // pred_check_branch
      %36 = sbr.rel (0) target = $region13
    $region12: #{tpu_custom_call.1} parent=1 // pred_region
      _
    $region13: #{tpu_custom_call.1} parent=1 // pred_fallthru
      _
    // Predicated region
    $region14: #{tpu_custom_call.1} parent=1 // pred_check
      _
    $region15: #{tpu_custom_call.1} parent=1 // pred_check_branch
      %38 = sbr.rel (0) target = $region17
    $region16: #{tpu_custom_call.1} parent=1 // pred_region
      _
    $region17: #{tpu_custom_call.1} parent=1 // pred_fallthru
      _
    // Predicated region
    $region18: #{tpu_custom_call.1} parent=1 // pred_check
      _
    $region19: #{tpu_custom_call.1} parent=1 // pred_check_branch
      %40 = sbr.rel (0) target = $region21
    $region20: #{tpu_custom_call.1} parent=1 // pred_region
      _
    $region21: #{tpu_custom_call.1} parent=1 // pred_fallthru
      _
    // Predicated region
    $region22: #{tpu_custom_call.1} parent=1 // pred_check
      _
    $region23: #{tpu_custom_call.1} parent=1 // pred_check_branch
      %42 = sbr.rel (0) target = $region25
    $region24: #{tpu_custom_call.1} parent=1 // pred_region
      %43 = dma.done [#allocation4], 128
    $region25: #{tpu_custom_call.1} parent=1 // pred_fallthru
      _
    // Predicated region
    $region26: #{tpu_custom_call.1} parent=1 // pred_check
      _
    $region27: #{tpu_custom_call.1} parent=1 // pred_check_branch
      %45 = sbr.rel (0) target = $region29
    $region28: #{tpu_custom_call.1} parent=1 // pred_region
      %46 = dma.done [#allocation6], 512
    $region29: #{tpu_custom_call.1} parent=1 // pred_fallthru
      _
    %v47 = vld [vmem:[#allocation3] sm:$0xff]
    %v48 = vld [vmem:[#allocation5] sm:$0xff]
    %v49 = vld [vmem:[#allocation5 + $0x8] sm:$0xff]
    %v50 = vld [vmem:[#allocation5 + $0x10] sm:$0xff]
    %v51 = vld [vmem:[#allocation5 + $0x18] sm:$0x3f]
    %v52 = vld [vmem:[%s2] sm:$0x1]
    %v54 = vlaneseq
    %v55 = vshrl.u32 %v54, 7
    %v56 = vsub.s32 0, %v55
    %v57 = vrot.slane %v52, %v56
    %vm59 = vcmask 244736
    %v61 = vsel %vm59, %v47, 0
    %vm63 = vcmask 1045504
    %v65 = vsel %vm63, %v51, 0
    %67 = vmatprep.subr.mxu0 0.0
    %68 = vmatpush1.msra.mxu0 %v48
    %69 = vmatprep.subr.mxu0 0.0
    %70 = vmatpush1.msra.mxu0 %v49
    %71 = vmatprep.subr.mxu0 0.0
    %72 = vmatpush1.msra.mxu0 %v50
    %73 = vmatprep.subr.mxu0 0.0
    %74 = vmatpush1.msra.mxu0 %v65
    %75 = vmatprep.subr.mxu0 0.0
    %76 = vmatpush1.msra.mxu0 0.0
    %77 = vmatprep.subr.mxu0 0.0
    %78 = vmatpush1.msra.mxu0 0.0
    %79 = vmatprep.subr.mxu0 0.0
    %80 = vmatpush1.msra.mxu0 0.0
    %81 = vmatprep.subr.mxu0 0.0
    %82 = vmatpush1.msra.mxu0 0.0
    %83 = vmatprep.subr.mxu0 0.0
    %84 = vmatpush1.msra.mxu0 0.0
    %85 = vmatprep.subr.mxu0 0.0
    %86 = vmatpush1.msra.mxu0 0.0
    %87 = vmatprep.subr.mxu0 0.0
    %88 = vmatpush1.msra.mxu0 0.0
    %89 = vmatprep.subr.mxu0 0.0
    %90 = vmatpush1.msra.mxu0 0.0
    %91 = vmatprep.subr.mxu0 0.0
    %92 = vmatpush1.msra.mxu0 0.0
    %93 = vmatprep.subr.mxu0 0.0
    %94 = vmatpush1.msra.mxu0 0.0
    %95 = vmatprep.subr.mxu0 0.0
    %96 = vmatpush1.msra.mxu0 0.0
    %97 = vmatprep.subr.mxu0 0.0
    %98 = vmatpush1.msra.mxu0 0.0
    %99 = vmatprep.subr.mxu0 0.0
    %100 = vmatpush1.msra.mxu0 0.0
    %101 = vmatprep.subr.mxu0 0.0
    %102 = vmatpush1.msra.mxu0 0.0
    %103 = vmatprep.subr.mxu0 0.0
    %104 = vmatpush1.msra.mxu0 0.0
    %105 = vmatprep.subr.mxu0 0.0
    %106 = vmatpush1.msra.mxu0 0.0
    %107 = vmatprep.subr.mxu0 0.0
    %108 = vmatpush1.msra.mxu0 0.0
    %109 = vmatprep.subr.mxu0 0.0
    %110 = vmatpush1.msra.mxu0 0.0
    %111 = vmatprep.subr.mxu0 0.0
    %112 = vmatpush1.msra.mxu0 0.0
    %113 = vmatprep.subr.mxu0 0.0
    %114 = vmatpush1.msra.mxu0 0.0
    %115 = vmatprep.subr.mxu0 0.0
    %116 = vmatpush1.msra.mxu0 0.0
    %117 = vmatprep.subr.mxu0 0.0
    %118 = vmatpush1.msra.mxu0 0.0
    %119 = vmatprep.subr.mxu0 0.0
    %120 = vmatpush1.msra.mxu0 0.0
    %121 = vmatprep.subr.mxu0 0.0
    %122 = vmatpush1.msra.mxu0 0.0
    %123 = vmatprep.subr.mxu0 0.0
    %124 = vmatpush1.msra.mxu0 0.0
    %125 = vmatprep.subr.mxu0 0.0
    %126 = vmatpush1.msra.mxu0 0.0
    %127 = vmatprep.subr.mxu0 0.0
    %128 = vmatpush1.msra.mxu0 0.0
    %129 = vmatprep.subr.mxu0 0.0
    %130 = vmatpush1.msra.mxu0 0.0
    %131 = vmatprep.mubr.f32.mxu0 0.0
    %132 = vmatmul.mubr.f32.gmra.mrb[0].mxu0 %v61
    %v133 = vpop.f32.mrb[0].mxu0
    %v134 = vadd.f32 %v57, %v133
    %v135 = vpop.f32.mrb[0].mxu0
    %136 = vdwg.mxu0
    %v137 = vmax.f32 %v134, 0.0
    %v138 = vld [vmem:[%s3] sm:$0x1]
    %v140 = vlaneseq
    %v141 = vshrl.u32 %v140, 7
    %v142 = vsub.s32 0, %v141
    %v143 = vrot.slane %v138, %v142
    %v145 = vmul.f32 %v137, %v143
    %vm146 = vcmask 326656
    %v147 = vsel %vm146, %v145, 0.0
    %148 = vadd.xlane.f32.xlu0 %v147
    %v149 = vpop.xlane.xlu0 %148
    %s150 = sld [smem:[#allocation2]]
    %v151 = vstv %s150
    %v152 = vadd.f32 %v149, %v151
    %v153 = vsub.f32 0.0, %v152
    %v154 = vmul.f32 %v153, 1.442695
    %v155 = vpow.pop %v154
    %v156 = vadd.f32 %v155, 1.0
    %v157 = vrcp.pop %v156
    %vm158 = vcmask 7168
    %159 = vst.msk [vmem:[%s5] sm:$0xff] %vm158, %v157
    // Predicated region
    $region30: #{tpu_custom_call.1} parent=1 // pred_check
      _
    $region31: #{tpu_custom_call.1} parent=1 // pred_check_branch
      %161 = sbr.rel (0) target = $region33
    $region32: #{tpu_custom_call.1} parent=1 // pred_region
      _
    $region33: #{tpu_custom_call.1} parent=1 // pred_fallthru
      _
    // Predicated region
    $region34: #{tpu_custom_call.1} parent=1 // pred_check
      _
    $region35: #{tpu_custom_call.1} parent=1 // pred_check_branch
      %163 = sbr.rel (0) target = $region37
    $region36: #{tpu_custom_call.1} parent=1 // pred_region
      _
    $region37: #{tpu_custom_call.1} parent=1 // pred_fallthru
      _
    %164 = vsyncpa [#allocation4], 1
    %165 = vsyncpa [#allocation6], 1

</llo_original>
